<compile_context>
chip_gen: v7x
topology: tpu7x:2x2x1
jax: 0.10.0
libtpu: 0.0.40
codegen_flags: <defaults>
</compile_context>

<pallas_src>
import functools
import numpy as np
import jax
import jax.numpy as jnp
from jax.experimental import pallas as pl
from jax.experimental.pallas import tpu as pltpu

_MiB = 1024 * 1024


def _round_up(x, m):
    return ((x + m - 1) // m) * m


@functools.lru_cache(maxsize=None)
def _physical_vmem_bytes():
    """Best-effort per-core VMEM capacity (v5e/v6e: 128 MiB, v7x: 64 MiB)."""
    try:
        info = pltpu.get_tpu_info()
        cap = getattr(info, "vmem_capacity_bytes", None)
        if cap:
            return int(cap)
    except Exception:
        pass
    try:
        kind = jax.devices()[0].device_kind.lower()
        if "v7" in kind:
            return 64 * _MiB
        return 128 * _MiB
    except Exception:
        return 64 * _MiB            # conservative (v7x per-TensorCore)


def _vmem_limit_bytes():
    # ~96 MiB on 128 MiB parts (v5e/v6e), 48 MiB on 64 MiB parts (v7x).
    return min(96 * _MiB, (3 * _physical_vmem_bytes()) // 4)


def _pick_tiles(n_pad, itemsize, vmem_limit):
    """Largest lane-dense streamed (block_rows, block_cols) tile that fits the
    double-buffered VMEM budget.  Wide column blocks are preferred (unmasked
    lane-dense stores, long contiguous DMA rows)."""
    candidates = [c for c in (1024, 512, 256, 128) if n_pad % c == 0]
    stream_budget = int(vmem_limit * 0.6)      # streamed operand, x2 buffers
    block_cols = 128
    for c in candidates:
        if 2 * 128 * c * itemsize <= stream_budget:
            block_cols = c
            break
    block_rows = 128
    for c in candidates:
        if 2 * c * block_cols * itemsize <= stream_budget:
            block_rows = c
            break
    return block_cols, block_rows


def _should_fuse(n_pad, itemsize, vmem_limit):
    """Single fused pallas_call when both (n_pad, n_pad) operands fit in VMEM
    with generous headroom (small-graph / launch-overhead regime)."""
    resident = 2 * n_pad * n_pad * itemsize
    return 2 * resident + 4 * _MiB < vmem_limit


# ----------------------------------------------------------------------------
# Per-graph precompute (amortized): call once per graph, reuse across forwards
# ----------------------------------------------------------------------------
def edge_grad_conv_prepare(eigenvalues, eigenvectors, grad=None, *,
                           directional=True, compute_dtype=jnp.bfloat16):
    """Pads node count to a multiple of 128 and folds grad @ U so the kernels
    never multiply by `grad`:  out = grad @ (U @ y) == (grad @ U) @ y."""
    n = eigenvectors.shape[0]
    n_pad = _round_up(n, 128)
    pad = n_pad - n

    U = eigenvectors.astype(jnp.float32)
    if directional:
        assert grad is not None
        G = grad.astype(jnp.float32) @ U      # O(n^3) fold, once per graph
    else:
        G = U

    U_p = jnp.pad(U, ((0, pad), (0, pad)))
    Gt_p = jnp.pad(G, ((0, pad), (0, pad))).T
    evals_row = jnp.pad(eigenvalues.astype(jnp.float32), (0, pad)).reshape(1, n_pad)

    return {
        "n": n,
        "n_pad": n_pad,
        "compute_dtype": jnp.dtype(compute_dtype),
        "evals_row": evals_row,                     # (1, n_pad) f32
        "U": U_p.astype(compute_dtype),             # (n_pad, n_pad)
        "Gt": Gt_p.astype(compute_dtype),           # (n_pad, n_pad)
    }


# ----------------------------------------------------------------------------
# Per-forward apply
# ----------------------------------------------------------------------------
def edge_grad_conv_apply(prep, coefficients, x, *, block_cols=None,
                         block_rows=None, fused=None):
    n, n_pad = prep["n"], prep["n_pad"]
    compute_dtype = prep["compute_dtype"]
    evals_row, U_s, Gt_s = prep["evals_row"], prep["U"], prep["Gt"]

    in_c = x.shape[1]
    out_c, in_c2, deg1 = coefficients.shape
    assert in_c2 == in_c
    in_c_pad = _round_up(in_c, 8)
    out_c_pad = _round_up(out_c, 8)
    itemsize = compute_dtype.itemsize
    vmem_limit = _vmem_limit_bytes()

    # channel-major, zero-padded node signal  (in_c_pad, n_pad)
    xT = jnp.pad(x.astype(compute_dtype).T,
                 ((0, in_c_pad - in_c), (0, n_pad - n)))
    # coefficients -> single matmul weight  W[o, k*in_c_pad + i] = coef[o, i, k]
    coef_w = jnp.pad(jnp.transpose(coefficients.astype(jnp.float32), (0, 2, 1)),
                     ((0, out_c_pad - out_c), (0, 0), (0, in_c_pad - in_c)))
    coef_w = coef_w.reshape(out_c_pad, deg1 * in_c_pad)

    def _poly_mix(xtT, lam, w):
        # Z = stack_k(lambda^k * xtT): tile-aligned (in_c_pad, cols) pieces,
        # then one (out_c_pad, deg1*in_c_pad) @ (deg1*in_c_pad, cols) matmul.
        pw = jnp.ones_like(lam)                     # lambda^0 == 1 (pow(0,0)==1)
        pieces = []
        for _ in range(deg1):                       # deg+1 is tiny & static
            pieces.append(pw * xtT)
            pw = pw * lam
        z = jnp.concatenate(pieces, axis=0)         # (deg1*in_c_pad, cols)
        return jnp.dot(w, z, preferred_element_type=jnp.float32)

    if fused is None:
        fused = _should_fuse(n_pad, itemsize, vmem_limit)

    # ------------------------- fused small-graph path -----------------------
    if fused:
        def fused_kernel(evals_ref, xT_ref, w_ref, u_ref, gt_ref, out_ref):
            xtT = jnp.dot(xT_ref[...], u_ref[...],
                          preferred_element_type=jnp.float32)
            yT = _poly_mix(xtT, evals_ref[...], w_ref[...])
            out_ref[...] = jnp.dot(yT, gt_ref[...].astype(jnp.float32),
                                   preferred_element_type=jnp.float32
                                   ).astype(out_ref.dtype)

        outT = pl.pallas_call(
            fused_kernel,
            out_shape=jax.ShapeDtypeStruct((out_c_pad, n_pad), jnp.float32),
            grid=(1,),
            in_specs=[
                pl.BlockSpec((1, n_pad), lambda i: (0, 0)),
                pl.BlockSpec((in_c_pad, n_pad), lambda i: (0, 0)),
                pl.BlockSpec((out_c_pad, deg1 * in_c_pad), lambda i: (0, 0)),
                pl.BlockSpec((n_pad, n_pad), lambda i: (0, 0)),
                pl.BlockSpec((n_pad, n_pad), lambda i: (0, 0)),
            ],
            out_specs=pl.BlockSpec((out_c_pad, n_pad), lambda i: (0, 0)),
            compiler_params=pltpu.CompilerParams(
                dimension_semantics=("arbitrary",),
                vmem_limit_bytes=vmem_limit),
            cost_estimate=pl.CostEstimate(
                flops=2 * n_pad * n_pad * (in_c_pad + out_c_pad)
                      + 2 * n_pad * deg1 * in_c_pad * out_c_pad,
                transcendentals=0,
                bytes_accessed=2 * n_pad * n_pad * itemsize
                               + n_pad * (in_c_pad * itemsize + out_c_pad * 4)),
        )(evals_row, xT, coef_w, U_s, Gt_s)
        return outT[:out_c, :n].T

    # --------------------------- tiled streaming path ------------------------
    if block_cols is None or block_rows is None:
        bc, br = _pick_tiles(n_pad, itemsize, vmem_limit)
        if block_cols is None:
            block_cols = bc
        if block_rows is None:
            block_rows = br
    assert n_pad % block_cols == 0 and n_pad % block_rows == 0
    nb = n_pad // block_cols
    nk = n_pad // block_rows

    # stage A: yT = W @ stack_k(lambda^k * (x^T U)),  K-accumulated over U rows
    def spectral_kernel(evals_ref, xT_ref, w_ref, u_ref, yT_ref, acc_ref):
        k = pl.program_id(1)

        @pl.when(k == 0)
        def _():
            acc_ref[...] = jnp.zeros_like(acc_ref)

        acc_ref[...] += jnp.dot(xT_ref[...], u_ref[...],
                                preferred_element_type=jnp.float32)

        @pl.when(k == pl.num_programs(1) - 1)
        def _():
            yT_ref[...] = _poly_mix(acc_ref[...], evals_ref[...],
                                    w_ref[...]).astype(yT_ref.dtype)

    yT = pl.pallas_call(
        spectral_kernel,
        out_shape=jax.ShapeDtypeStruct((out_c_pad, n_pad), jnp.float32),
        grid=(nb, nk),
        in_specs=[
            pl.BlockSpec((1, block_cols), lambda i, k: (0, i)),          # eigenvalues
            pl.BlockSpec((in_c_pad, block_rows), lambda i, k: (0, k)),   # x^T chunk
            pl.BlockSpec((out_c_pad, deg1 * in_c_pad), lambda i, k: (0, 0)),  # W (resident)
            pl.BlockSpec((block_rows, block_cols), lambda i, k: (k, i)),  # U tile (streamed)
        ],
        out_specs=pl.BlockSpec((out_c_pad, block_cols), lambda i, k: (0, i)),
        scratch_shapes=[pltpu.VMEM((in_c_pad, block_cols), jnp.float32)],
        compiler_params=pltpu.CompilerParams(
            dimension_semantics=("parallel", "arbitrary"),
            vmem_limit_bytes=vmem_limit),
        cost_estimate=pl.CostEstimate(
            flops=2 * n_pad * n_pad * in_c_pad
                  + 2 * n_pad * deg1 * in_c_pad * out_c_pad,
            transcendentals=0,
            bytes_accessed=n_pad * n_pad * itemsize
                           + nb * n_pad * in_c_pad * itemsize
                           + n_pad * out_c_pad * 4 + n_pad * 4),
    )(evals_row, xT, coef_w, U_s)

    # stage B: out^T = yT @ (grad @ U)^T, K-accumulated over G^T rows
    def synthesis_kernel(yT_ref, gt_ref, out_ref, acc_ref):
        k = pl.program_id(1)

        @pl.when(k == 0)
        def _():
            acc_ref[...] = jnp.zeros_like(acc_ref)

        acc_ref[...] += jnp.dot(yT_ref[...], gt_ref[...].astype(jnp.float32),
                                preferred_element_type=jnp.float32)

        @pl.when(k == pl.num_programs(1) - 1)
        def _():
            out_ref[...] = acc_ref[...].astype(out_ref.dtype)

    outT = pl.pallas_call(
        synthesis_kernel,
        out_shape=jax.ShapeDtypeStruct((out_c_pad, n_pad), jnp.float32),
        grid=(nb, nk),
        in_specs=[
            pl.BlockSpec((out_c_pad, block_rows), lambda i, k: (0, k)),   # yT chunk (f32)
            pl.BlockSpec((block_rows, block_cols), lambda i, k: (k, i)),  # G^T tile (streamed)
        ],
        out_specs=pl.BlockSpec((out_c_pad, block_cols), lambda i, k: (0, i)),
        scratch_shapes=[pltpu.VMEM((out_c_pad, block_cols), jnp.float32)],
        compiler_params=pltpu.CompilerParams(
            dimension_semantics=("parallel", "arbitrary"),
            vmem_limit_bytes=vmem_limit),
        cost_estimate=pl.CostEstimate(
            flops=2 * n_pad * n_pad * out_c_pad,
            transcendentals=0,
            bytes_accessed=n_pad * n_pad * itemsize
                           + nb * n_pad * out_c_pad * 4
                           + n_pad * out_c_pad * 4),
    )(yT, Gt_s)

    return outT[:out_c, :n].T     # (n, out_c), matching the PyTorch module


def edge_grad_conv_pallas(eigenvalues, eigenvectors, coefficients, x, grad=None, *,
                          directional=True, compute_dtype=jnp.bfloat16,
                          block_cols=None, block_rows=None, fused=None):
    """One-shot convenience wrapper.  For repeated forwards on the same graph,
    call edge_grad_conv_prepare() once and edge_grad_conv_apply() per forward."""
    prep = edge_grad_conv_prepare(eigenvalues, eigenvectors, grad,
                                  directional=directional,
                                  compute_dtype=compute_dtype)
    return edge_grad_conv_apply(prep, coefficients, x, block_cols=block_cols,
                                block_rows=block_rows, fused=fused)


# ----------------------------------------------------------------------------
# Pure-JAX reference (mirrors the PyTorch forward, rotate_eigenspaces=False)
# ----------------------------------------------------------------------------
def edge_grad_conv_reference(eigenvalues, eigenvectors, coefficients, x, grad,
                             *, directional=True):
    deg1 = coefficients.shape[-1]
    powers = jnp.arange(deg1, dtype=eigenvalues.dtype)
    vand = eigenvalues[:, None] ** powers                          # (n, d+1)
    c = (vand[:, None, None, :] * coefficients[None]).sum(-1)      # (n, out, in)
    xt = eigenvectors.T @ x                                        # (n, in)
    y = (c * xt[:, None, :]).sum(-1)                               # (n, out)
    out = eigenvectors @ y                                         # (n, out)
    if directional:
        out = grad @ out
    return out


# ----------------------------------------------------------------------------
# Host-side graph glue (replaces networkx / edge_gradient helpers)
# ----------------------------------------------------------------------------
def build_graph_inputs(n, key):
    """Deterministic random connected graph; returns (A, L, eigvals, eigvecs, grad)."""
    # TODO(synk): networkx graph / normalized-Laplacian construction is data
    # preparation with no Pallas equivalent; done host-side with numpy.
    u = np.asarray(jax.random.uniform(key, (n, n)))
    A = (np.triu(u, 1) < 0.2).astype(np.float64)
    A = A + A.T
    idx = np.arange(n)                       # ring edges guarantee connectivity
    A[idx, (idx + 1) % n] = 1.0
    A[(idx + 1) % n, idx] = 1.0
    np.fill_diagonal(A, 0.0)

    # normalized Laplacian  L = I - D^{-1/2} A D^{-1/2}
    d = A.sum(axis=1)
    d_inv_sqrt = 1.0 / np.sqrt(d)
    L = np.eye(n) - (d_inv_sqrt[:, None] * A * d_inv_sqrt[None, :])

    # TODO(synk): eigendecomposition (torch.linalg.eigh) has no Pallas
    # equivalent; computed host-side as glue.
    eigvals, eigvecs = np.linalg.eigh(L)
    eigvals = np.clip(eigvals, 0.0, None)    # L is PSD; clamp eigh rounding noise

    # edge_gradient(A, fiedler): grad[i, j] = A[i, j] * (f[j] - f[i]),
    # then divided by per-row absolute sums (numpy broadcasting, as original).
    f = eigvecs[:, 1]
    grad = A * (f[None, :] - f[:, None])
    abs_sum_rows = np.sum(np.abs(grad), axis=1)
    abs_sum_rows = np.where(abs_sum_rows == 0.0, 1.0, abs_sum_rows)
    grad = grad / abs_sum_rows

    return (A.astype(np.float32), L.astype(np.float32),
            eigvals.astype(np.float32), eigvecs.astype(np.float32),
            grad.astype(np.float32))


# ----------------------------------------------------------------------------
# main
# ----------------------------------------------------------------------------
if __name__ == "__main__":
    in_channels, out_channels, deg = 4, 8, 3

    key = jax.random.PRNGKey(0)
    k_graph, k_x, k_coef, k_graph2, k_x2 = jax.random.split(key, 5)

    # TODO(synk): rotate_eigenspaces=True branch depends on the undefined
    # orthogonal_block_diagonal_from_eigenvalues helper; only the default
    # (rotate_eigenspaces=False) branch is implemented.

    coefficients = 0.1 * jax.random.normal(
        k_coef, (out_channels, in_channels, deg + 1), dtype=jnp.float32)

    # ---- graph 1: n = 256 (128-aligned; exercises fused AND tiled paths) ----
    n = 256
    A, L, ev_np, evec_np, grad_np = build_graph_inputs(n, k_graph)
    x = jax.random.normal(k_x, (n, in_channels), dtype=jnp.float32)
    eigvals, eigvecs, grad = jnp.asarray(ev_np), jnp.asarray(evec_np), jnp.asarray(grad_np)

    ref = edge_grad_conv_reference(eigvals, eigvecs, coefficients, x, grad)

    # f32 paths: tight validation of kernel logic / tiling / accumulator.
    prep32 = edge_grad_conv_prepare(eigvals, eigvecs, grad,
                                    compute_dtype=jnp.float32)
    out_fused = jax.block_until_ready(
        edge_grad_conv_apply(prep32, coefficients, x))                 # fused (auto)
    np.testing.assert_allclose(np.asarray(out_fused), np.asarray(ref),
                               rtol=1e-3, atol=1e-3)

    out_tiled = jax.block_until_ready(
        edge_grad_conv_apply(prep32, coefficients, x, fused=False,
                             block_cols=128, block_rows=128))          # 2x2 grid
    np.testing.assert_allclose(np.asarray(out_tiled), np.asarray(ref),
                               rtol=1e-3, atol=1e-3)

    # bf16 streaming path (default / fast): bf16 operands, f32 accumulation,
    # yT kept f32 between stages.
    prep16 = edge_grad_conv_prepare(eigvals, eigvecs, grad,
                                    compute_dtype=jnp.bfloat16)
    out_bf16 = jax.block_until_ready(
        edge_grad_conv_apply(prep16, coefficients, x, fused=False,
                             block_cols=128, block_rows=128))
    np.testing.assert_allclose(np.asarray(out_bf16), np.asarray(ref),
                               rtol=2e-2, atol=2e-2)

    # ---- graph 2: n = 200 (NOT 128-aligned; exercises zero-padding path) ----
    n2 = 200
    A2, L2, ev2_np, evec2_np, grad2_np = build_graph_inputs(n2, k_graph2)
    x2 = jax.random.normal(k_x2, (n2, in_channels), dtype=jnp.float32)
    ev2, evec2, grad2 = jnp.asarray(ev2_np), jnp.asarray(evec2_np), jnp.asarray(grad2_np)
    ref2 = edge_grad_conv_reference(ev2, evec2, coefficients, x2, grad2)

    out2 = jax.block_until_ready(
        edge_grad_conv_pallas(ev2, evec2, coefficients, x2, grad2,
                              compute_dtype=jnp.float32, fused=False,
                              block_cols=128, block_rows=128))
    np.testing.assert_allclose(np.asarray(out2), np.asarray(ref2),
                               rtol=1e-3, atol=1e-3)

    print("KERNEL_OK")
</pallas_src>

<mosaic_0001>
module attributes {stable_mosaic.version = 11 : i64} {
  func.func @fused_kernel(%arg0: i32, %arg1: memref<1x256xf32, #tpu.memory_space<vmem>>, %arg2: memref<8x256xf32, #tpu.memory_space<vmem>>, %arg3: memref<8x32xf32, #tpu.memory_space<vmem>>, %arg4: memref<256x256xf32, #tpu.memory_space<vmem>>, %arg5: memref<256x256xf32, #tpu.memory_space<vmem>>, %arg6: memref<8x256xf32, #tpu.memory_space<vmem>>) attributes {dimension_semantics = [#tpu.dimension_semantics<arbitrary>], iteration_bounds = array<i64: 1>, scalar_prefetch = 0 : i64, scratch_operands = 0 : i64, tpu.core_type = #tpu.core_type<tc>, window_params = [{pipeline_mode = #tpu.pipeline_mode<synchronous>, transform_indices = @transform_0, window_bounds = array<i64: 1, 256>}, {pipeline_mode = #tpu.pipeline_mode<synchronous>, transform_indices = @transform_1, window_bounds = array<i64: 8, 256>}, {pipeline_mode = #tpu.pipeline_mode<synchronous>, transform_indices = @transform_2, window_bounds = array<i64: 8, 32>}, {pipeline_mode = #tpu.pipeline_mode<synchronous>, transform_indices = @transform_3, window_bounds = array<i64: 256, 256>}, {pipeline_mode = #tpu.pipeline_mode<synchronous>, transform_indices = @transform_4, window_bounds = array<i64: 256, 256>}, {pipeline_mode = #tpu.pipeline_mode<synchronous>, transform_indices = @transform_5, window_bounds = array<i64: 8, 256>}]} {
    %c0 = arith.constant 0 : index
    %c0_0 = arith.constant 0 : index
    %0 = vector.load %arg2[%c0, %c0_0] : memref<8x256xf32, #tpu.memory_space<vmem>>, vector<8x256xf32>
    %c0_1 = arith.constant 0 : index
    %c0_2 = arith.constant 0 : index
    %1 = vector.load %arg4[%c0_1, %c0_2] : memref<256x256xf32, #tpu.memory_space<vmem>>, vector<256x256xf32>
    %cst = arith.constant dense<0.000000e+00> : vector<8x256xf32>
    %2 = tpu.matmul %0, %1, %cst {dimension_numbers = #tpu.dot_dimension_numbers<[1], [0], [0], [1], [0, 0, 1, 1], [], []>} : vector<8x256xf32>, vector<256x256xf32>, vector<8x256xf32> -> vector<8x256xf32>
    %c0_3 = arith.constant 0 : index
    %c0_4 = arith.constant 0 : index
    %3 = vector.load %arg1[%c0_3, %c0_4] : memref<1x256xf32, #tpu.memory_space<vmem>>, vector<1x256xf32>
    %c0_5 = arith.constant 0 : index
    %c0_6 = arith.constant 0 : index
    %4 = vector.load %arg3[%c0_5, %c0_6] : memref<8x32xf32, #tpu.memory_space<vmem>>, vector<8x32xf32>
    %cst_7 = arith.constant 1.000000e+00 : f32
    %5 = vector.broadcast %cst_7 : f32 to vector<1x256xf32>
    %6 = vector.broadcast %5 : vector<1x256xf32> to vector<8x256xf32>
    %7 = arith.mulf %6, %2 : vector<8x256xf32>
    %8 = arith.mulf %5, %3 : vector<1x256xf32>
    %9 = vector.broadcast %8 : vector<1x256xf32> to vector<8x256xf32>
    %10 = arith.mulf %9, %2 : vector<8x256xf32>
    %11 = arith.mulf %8, %3 : vector<1x256xf32>
    %12 = vector.broadcast %11 : vector<1x256xf32> to vector<8x256xf32>
    %13 = arith.mulf %12, %2 : vector<8x256xf32>
    %14 = arith.mulf %11, %3 : vector<1x256xf32>
    %15 = vector.broadcast %14 : vector<1x256xf32> to vector<8x256xf32>
    %16 = arith.mulf %15, %2 : vector<8x256xf32>
    %17 = tpu.concatenate %7, %10, %13, %16 in 0 : vector<8x256xf32>, vector<8x256xf32>, vector<8x256xf32>, vector<8x256xf32> -> vector<32x256xf32>
    %cst_8 = arith.constant dense<0.000000e+00> : vector<8x256xf32>
    %18 = tpu.matmul %4, %17, %cst_8 {dimension_numbers = #tpu.dot_dimension_numbers<[1], [0], [0], [1], [0, 0, 1, 1], [], []>} : vector<8x32xf32>, vector<32x256xf32>, vector<8x256xf32> -> vector<8x256xf32>
    %c0_9 = arith.constant 0 : index
    %c0_10 = arith.constant 0 : index
    %19 = vector.load %arg5[%c0_9, %c0_10] : memref<256x256xf32, #tpu.memory_space<vmem>>, vector<256x256xf32>
    %cst_11 = arith.constant dense<0.000000e+00> : vector<8x256xf32>
    %20 = tpu.matmul %18, %19, %cst_11 {dimension_numbers = #tpu.dot_dimension_numbers<[1], [0], [0], [1], [0, 0, 1, 1], [], []>} : vector<8x256xf32>, vector<256x256xf32>, vector<8x256xf32> -> vector<8x256xf32>
    %c0_12 = arith.constant 0 : index
    %c0_13 = arith.constant 0 : index
    %21 = vector.load %arg6[%c0_12, %c0_13] : memref<8x256xf32, #tpu.memory_space<vmem>>, vector<8x256xf32>
    tpu.vector_store %arg6[%c0_12, %c0_13], %20 {strides = array<i32>} : memref<8x256xf32, #tpu.memory_space<vmem>>, vector<8x256xf32>,
    return
  }
  func.func @transform_0(%arg0: i32) -> (i32, i32) {
    %c0_i32 = arith.constant 0 : i32
    %c0_i32_0 = arith.constant 0 : i32
    %c0_i32_1 = arith.constant 0 : i32
    return %c0_i32, %c0_i32_0 : i32, i32
  }
  func.func @transform_1(%arg0: i32) -> (i32, i32) {
    %c0_i32 = arith.constant 0 : i32
    %c0_i32_0 = arith.constant 0 : i32
    %c0_i32_1 = arith.constant 0 : i32
    return %c0_i32, %c0_i32_0 : i32, i32
  }
  func.func @transform_2(%arg0: i32) -> (i32, i32) {
    %c0_i32 = arith.constant 0 : i32
    %c0_i32_0 = arith.constant 0 : i32
    %c0_i32_1 = arith.constant 0 : i32
    return %c0_i32, %c0_i32_0 : i32, i32
  }
  func.func @transform_3(%arg0: i32) -> (i32, i32) {
    %c0_i32 = arith.constant 0 : i32
    %c0_i32_0 = arith.constant 0 : i32
    %c0_i32_1 = arith.constant 0 : i32
    return %c0_i32, %c0_i32_0 : i32, i32
  }
  func.func @transform_4(%arg0: i32) -> (i32, i32) {
    %c0_i32 = arith.constant 0 : i32
    %c0_i32_0 = arith.constant 0 : i32
    %c0_i32_1 = arith.constant 0 : i32
    return %c0_i32, %c0_i32_0 : i32, i32
  }
  func.func @transform_5(%arg0: i32) -> (i32, i32) {
    %c0_i32 = arith.constant 0 : i32
    %c0_i32_0 = arith.constant 0 : i32
    %c0_i32_1 = arith.constant 0 : i32
    return %c0_i32, %c0_i32_0 : i32, i32
  }
}

</mosaic_0001>

<llo_original>
// kernel: tpu_custom_call.1
$region0: #{tpu_custom_call.1}
  #allocation0 [shape = 'u32[]', space=smem, size = 0x4, offset = 0x4, fixed_abs, tag = 'smem constant byte address 0x4 - core index']
  #allocation1 [shape = 'u32[144,128]{1,0:T(1,128)}', space=vmem, size = 0x12000, scoped, tag = 'internal scratch']
  %s0 = inlined_call_operand.hbm [shape: f32[1,256], index: 0, kind: input, shape index: {}]
  %s1 = inlined_call_operand.hbm [shape: f32[8,256], index: 1, kind: input, shape index: {}]
  %s2 = inlined_call_operand.hbm [shape: f32[8,32], index: 2, kind: input, shape index: {}]
  %s3 = inlined_call_operand.hbm [shape: f32[256,256], index: 3, kind: input, shape index: {}]
  %s4 = inlined_call_operand.hbm [shape: f32[256,256], index: 4, kind: input, shape index: {}]
  %s5 = inlined_call_operand.hbm [shape: f32[8,256], index: 5, kind: output, shape index: {}]
  %s6 = sld [smem:[#allocation0]]
  $region50: #{tpu_custom_call.1} parent=0
    _
  %s8 = ssub.s32 1, %s6
  %s9 = scalar_select 0, %s8, %s6
  $region1: #{tpu_custom_call.1} parent=0
    #allocation2 [shape = 'u8[1024]{0}', space=vmem, size = 0x400, scoped, tag = 'input window, operand 0, single buffered']
    #allocation3 [shape = 's32[1]{0}', space=sflag, size = 0x4, scoped, tag = 'scoped memory for tpu_custom_call.1']
    #allocation4 [shape = 's32[1]{0}', space=sflag, size = 0x4, scoped, tag = 'scoped memory for tpu_custom_call.1']
    #allocation5 [shape = 'u8[8192]{0}', space=vmem, size = 0x2000, scoped, tag = 'input window, operand 1, single buffered']
    #allocation6 [shape = 's32[1]{0}', space=sflag, size = 0x4, scoped, tag = 'scoped memory for tpu_custom_call.1']
    #allocation7 [shape = 'u8[4096]{0}', space=vmem, size = 0x1000, scoped, tag = 'input window, operand 2, single buffered']
    #allocation8 [shape = 'u8[262144]{0}', space=vmem, size = 0x40000, scoped, tag = 'input window, operand 3, single buffered']
    #allocation9 [shape = 's32[1]{0}', space=sflag, size = 0x4, scoped, tag = 'scoped memory for tpu_custom_call.1']
    #allocation10 [shape = 'u8[262144]{0}', space=vmem, size = 0x40000, scoped, tag = 'input window, operand 4, single buffered']
    #allocation11 [shape = 'u8[8192]{0}', space=vmem, size = 0x2000, scoped, tag = 'output window, operand 0, single buffered']
    %10 = vsyncpa [#allocation3], 0
    %11 = vsyncpa [#allocation6], 0
    %12 = vsyncpa [#allocation9], 0
    %13 = vsyncpa [#allocation4], 0
    // Predicated region
    $region2: #{tpu_custom_call.1} parent=1 // pred_check
      _
    $region3: #{tpu_custom_call.1} parent=1 // pred_check_branch
      %15 = sbr.rel (0) target = $region5
    $region4: #{tpu_custom_call.1} parent=1 // pred_region
      %s17 = ssub.s32 32, 32
      %18 = vsyncadd [#allocation3], %s17
      %s20 = sshll.u32 [#allocation2], 4
      %s21 = int_to_ptr.vmem [resolvable:$true] %s20
      %23 = dma.hbm_to_vmem [thread:$0]  %s0, 32, %s21, [#allocation3]
    $region5: #{tpu_custom_call.1} parent=1 // pred_fallthru
      _
    // Predicated region
    $region6: #{tpu_custom_call.1} parent=1 // pred_check
      _
    $region7: #{tpu_custom_call.1} parent=1 // pred_check_branch
      %25 = sbr.rel (0) target = $region9
    $region8: #{tpu_custom_call.1} parent=1 // pred_region
      %s27 = ssub.s32 256, 256
      %28 = vsyncadd [#allocation6], %s27
      %s30 = sshll.u32 [#allocation5], 4
      %s31 = int_to_ptr.vmem [resolvable:$true] %s30
      %33 = dma.hbm_to_vmem [thread:$0]  %s1, 256, %s31, [#allocation6]
    $region9: #{tpu_custom_call.1} parent=1 // pred_fallthru
      _
    // Predicated region
    $region10: #{tpu_custom_call.1} parent=1 // pred_check
      _
    $region11: #{tpu_custom_call.1} parent=1 // pred_check_branch
      %35 = sbr.rel (0) target = $region13
    $region12: #{tpu_custom_call.1} parent=1 // pred_region
      %s37 = ssub.s32 128, 128
      %38 = vsyncadd [#allocation6], %s37
      %s40 = sshll.u32 [#allocation7], 4
      %s41 = int_to_ptr.vmem [resolvable:$true] %s40
      %43 = dma.hbm_to_vmem [thread:$0]  %s2, 128, %s41, [#allocation6]
    $region13: #{tpu_custom_call.1} parent=1 // pred_fallthru
      _
    // Predicated region
    $region14: #{tpu_custom_call.1} parent=1 // pred_check
      _
    $region15: #{tpu_custom_call.1} parent=1 // pred_check_branch
      %45 = sbr.rel (0) target = $region17
    $region16: #{tpu_custom_call.1} parent=1 // pred_region
      %s47 = ssub.s32 8192, 8192
      %48 = vsyncadd [#allocation9], %s47
      %s49 = sshll.u32 [#allocation8], 4
      %s50 = int_to_ptr.vmem [resolvable:$true] %s49
      %55 = dma.hbm_to_vmem [thread:$0]  %s3, 8192, %s50, [#allocation9], 256, 256, 16
    $region17: #{tpu_custom_call.1} parent=1 // pred_fallthru
      _
    // Predicated region
    $region18: #{tpu_custom_call.1} parent=1 // pred_check
      _
    $region19: #{tpu_custom_call.1} parent=1 // pred_check_branch
      %57 = sbr.rel (0) target = $region21
    $region20: #{tpu_custom_call.1} parent=1 // pred_region
      %s59 = ssub.s32 8192, 8192
      %60 = vsyncadd [#allocation9], %s59
      %s61 = sshll.u32 [#allocation10], 4
      %s62 = int_to_ptr.vmem [resolvable:$true] %s61
      %67 = dma.hbm_to_vmem [thread:$0]  %s4, 8192, %s62, [#allocation9], 256, 256, 16
    $region21: #{tpu_custom_call.1} parent=1 // pred_fallthru
      _
    // Predicated region
    $region22: #{tpu_custom_call.1} parent=1 // pred_check
      _
    $region23: #{tpu_custom_call.1} parent=1 // pred_check_branch
      %69 = sbr.rel (0) target = $region25
    $region24: #{tpu_custom_call.1} parent=1 // pred_region
      %70 = dma.done [#allocation3], 32
    $region25: #{tpu_custom_call.1} parent=1 // pred_fallthru
      _
    // Predicated region
    $region26: #{tpu_custom_call.1} parent=1 // pred_check
      _
    $region27: #{tpu_custom_call.1} parent=1 // pred_check_branch
      %72 = sbr.rel (0) target = $region29
    $region28: #{tpu_custom_call.1} parent=1 // pred_region
      %73 = dma.done [#allocation6], 256
    $region29: #{tpu_custom_call.1} parent=1 // pred_fallthru
      _
    // Predicated region
    $region30: #{tpu_custom_call.1} parent=1 // pred_check
      _
    $region31: #{tpu_custom_call.1} parent=1 // pred_check_branch
      %75 = sbr.rel (0) target = $region33
    $region32: #{tpu_custom_call.1} parent=1 // pred_region
      %76 = dma.done [#allocation6], 128
    $region33: #{tpu_custom_call.1} parent=1 // pred_fallthru
      _
    // Predicated region
    $region34: #{tpu_custom_call.1} parent=1 // pred_check
      _
    $region35: #{tpu_custom_call.1} parent=1 // pred_check_branch
      %78 = sbr.rel (0) target = $region37
    $region36: #{tpu_custom_call.1} parent=1 // pred_region
      %79 = dma.done [#allocation9], 8192
    $region37: #{tpu_custom_call.1} parent=1 // pred_fallthru
      _
    // Predicated region
    $region38: #{tpu_custom_call.1} parent=1 // pred_check
      _
    $region39: #{tpu_custom_call.1} parent=1 // pred_check_branch
      %81 = sbr.rel (0) target = $region41
    $region40: #{tpu_custom_call.1} parent=1 // pred_region
      %82 = dma.done [#allocation9], 8192
    $region41: #{tpu_custom_call.1} parent=1 // pred_fallthru
      _
    %v83 = vld [vmem:[#allocation5] sm:$0xff]
    %v84 = vld [vmem:[#allocation5 + $0x8] sm:$0xff]
    %v85 = vld [vmem:[#allocation8] sm:$0xff]
    %v86 = vld [vmem:[#allocation8 + $0x8] sm:$0xff]
    %v87 = vld [vmem:[#allocation8 + $0x10] sm:$0xff]
    %v88 = vld [vmem:[#allocation8 + $0x18] sm:$0xff]
    %v89 = vld [vmem:[#allocation8 + $0x20] sm:$0xff]
    %v90 = vld [vmem:[#allocation8 + $0x28] sm:$0xff]
    %v91 = vld [vmem:[#allocation8 + $0x30] sm:$0xff]
    %v92 = vld [vmem:[#allocation8 + $0x38] sm:$0xff]
    %v93 = vld [vmem:[#allocation8 + $0x40] sm:$0xff]
    %v94 = vld [vmem:[#allocation8 + $0x48] sm:$0xff]
    %v95 = vld [vmem:[#allocation8 + $0x50] sm:$0xff]
    %v96 = vld [vmem:[#allocation8 + $0x58] sm:$0xff]
    %v97 = vld [vmem:[#allocation8 + $0x60] sm:$0xff]
    %v98 = vld [vmem:[#allocation8 + $0x68] sm:$0xff]
    %v99 = vld [vmem:[#allocation8 + $0x70] sm:$0xff]
    %v100 = vld [vmem:[#allocation8 + $0x78] sm:$0xff]
    %v101 = vld [vmem:[#allocation8 + $0x80] sm:$0xff]
    %v102 = vld [vmem:[#allocation8 + $0x88] sm:$0xff]
    %v103 = vld [vmem:[#allocation8 + $0x90] sm:$0xff]
    %v104 = vld [vmem:[#allocation8 + $0x98] sm:$0xff]
    %v105 = vld [vmem:[#allocation8 + $0xa0] sm:$0xff]
    %v106 = vld [vmem:[#allocation8 + $0xa8] sm:$0xff]
    %v107 = vld [vmem:[#allocation8 + $0xb0] sm:$0xff]
    %v108 = vld [vmem:[#allocation8 + $0xb8] sm:$0xff]
    %v109 = vld [vmem:[#allocation8 + $0xc0] sm:$0xff]
    %v110 = vld [vmem:[#allocation8 + $0xc8] sm:$0xff]
    %v111 = vld [vmem:[#allocation8 + $0xd0] sm:$0xff]
    %v112 = vld [vmem:[#allocation8 + $0xd8] sm:$0xff]
    %v113 = vld [vmem:[#allocation8 + $0xe0] sm:$0xff]
    %v114 = vld [vmem:[#allocation8 + $0xe8] sm:$0xff]
    %v115 = vld [vmem:[#allocation8 + $0xf0] sm:$0xff]
    %v116 = vld [vmem:[#allocation8 + $0xf8] sm:$0xff]
    %v117 = vld [vmem:[#allocation8 + $0x100] sm:$0xff]
    %v118 = vld [vmem:[#allocation8 + $0x108] sm:$0xff]
    %v119 = vld [vmem:[#allocation8 + $0x110] sm:$0xff]
    %v120 = vld [vmem:[#allocation8 + $0x118] sm:$0xff]
    %v121 = vld [vmem:[#allocation8 + $0x120] sm:$0xff]
    %v122 = vld [vmem:[#allocation8 + $0x128] sm:$0xff]
    %v123 = vld [vmem:[#allocation8 + $0x130] sm:$0xff]
    %v124 = vld [vmem:[#allocation8 + $0x138] sm:$0xff]
    %v125 = vld [vmem:[#allocation8 + $0x140] sm:$0xff]
    %v126 = vld [vmem:[#allocation8 + $0x148] sm:$0xff]
    %v127 = vld [vmem:[#allocation8 + $0x150] sm:$0xff]
    %v128 = vld [vmem:[#allocation8 + $0x158] sm:$0xff]
    %v129 = vld [vmem:[#allocation8 + $0x160] sm:$0xff]
    %v130 = vld [vmem:[#allocation8 + $0x168] sm:$0xff]
    %v131 = vld [vmem:[#allocation8 + $0x170] sm:$0xff]
    %v132 = vld [vmem:[#allocation8 + $0x178] sm:$0xff]
    %v133 = vld [vmem:[#allocation8 + $0x180] sm:$0xff]
    %v134 = vld [vmem:[#allocation8 + $0x188] sm:$0xff]
    %v135 = vld [vmem:[#allocation8 + $0x190] sm:$0xff]
    %v136 = vld [vmem:[#allocation8 + $0x198] sm:$0xff]
    %v137 = vld [vmem:[#allocation8 + $0x1a0] sm:$0xff]
    %v138 = vld [vmem:[#allocation8 + $0x1a8] sm:$0xff]
    %v139 = vld [vmem:[#allocation8 + $0x1b0] sm:$0xff]
    %v140 = vld [vmem:[#allocation8 + $0x1b8] sm:$0xff]
    %v141 = vld [vmem:[#allocation8 + $0x1c0] sm:$0xff]
    %v142 = vld [vmem:[#allocation8 + $0x1c8] sm:$0xff]
    %v143 = vld [vmem:[#allocation8 + $0x1d0] sm:$0xff]
    %v144 = vld [vmem:[#allocation8 + $0x1d8] sm:$0xff]
    %v145 = vld [vmem:[#allocation8 + $0x1e0] sm:$0xff]
    %v146 = vld [vmem:[#allocation8 + $0x1e8] sm:$0xff]
    %v147 = vld [vmem:[#allocation8 + $0x1f0] sm:$0xff]
    %v148 = vld [vmem:[#allocation8 + $0x1f8] sm:$0xff]
    %149 = vmatprep.subr.mxu0 %v86
    %150 = vmatpush1.msra.mxu0 %v85
    %151 = vmatprep.subr.mxu0 %v88
    %152 = vmatpush1.msra.mxu0 %v87
    %153 = vmatprep.subr.mxu0 %v90
    %154 = vmatpush1.msra.mxu0 %v89
    %155 = vmatprep.subr.mxu0 %v92
    %156 = vmatpush1.msra.mxu0 %v91
    %157 = vmatprep.subr.mxu0 %v94
    %158 = vmatpush1.msra.mxu0 %v93
    %159 = vmatprep.subr.mxu0 %v96
    %160 = vmatpush1.msra.mxu0 %v95
    %161 = vmatprep.subr.mxu0 %v98
    %162 = vmatpush1.msra.mxu0 %v97
    %163 = vmatprep.subr.mxu0 %v100
    %164 = vmatpush1.msra.mxu0 %v99
    %165 = vmatprep.subr.mxu0 %v102
    %166 = vmatpush1.msra.mxu0 %v101
    %167 = vmatprep.subr.mxu0 %v104
    %168 = vmatpush1.msra.mxu0 %v103
    %169 = vmatprep.subr.mxu0 %v106
    %170 = vmatpush1.msra.mxu0 %v105
    %171 = vmatprep.subr.mxu0 %v108
    %172 = vmatpush1.msra.mxu0 %v107
    %173 = vmatprep.subr.mxu0 %v110
    %174 = vmatpush1.msra.mxu0 %v109
    %175 = vmatprep.subr.mxu0 %v112
    %176 = vmatpush1.msra.mxu0 %v111
    %177 = vmatprep.subr.mxu0 %v114
    %178 = vmatpush1.msra.mxu0 %v113
    %179 = vmatprep.subr.mxu0 %v116
    %180 = vmatpush1.msra.mxu0 %v115
    %181 = vmatprep.subr.mxu0 %v118
    %182 = vmatpush1.msra.mxu0 %v117
    %183 = vmatprep.subr.mxu0 %v120
    %184 = vmatpush1.msra.mxu0 %v119
    %185 = vmatprep.subr.mxu0 %v122
    %186 = vmatpush1.msra.mxu0 %v121
    %187 = vmatprep.subr.mxu0 %v124
    %188 = vmatpush1.msra.mxu0 %v123
    %189 = vmatprep.subr.mxu0 %v126
    %190 = vmatpush1.msra.mxu0 %v125
    %191 = vmatprep.subr.mxu0 %v128
    %192 = vmatpush1.msra.mxu0 %v127
    %193 = vmatprep.subr.mxu0 %v130
    %194 = vmatpush1.msra.mxu0 %v129
    %195 = vmatprep.subr.mxu0 %v132
    %196 = vmatpush1.msra.mxu0 %v131
    %197 = vmatprep.subr.mxu0 %v134
    %198 = vmatpush1.msra.mxu0 %v133
    %199 = vmatprep.subr.mxu0 %v136
    %200 = vmatpush1.msra.mxu0 %v135
    %201 = vmatprep.subr.mxu0 %v138
    %202 = vmatpush1.msra.mxu0 %v137
    %203 = vmatprep.subr.mxu0 %v140
    %204 = vmatpush1.msra.mxu0 %v139
    %205 = vmatprep.subr.mxu0 %v142
    %206 = vmatpush1.msra.mxu0 %v141
    %207 = vmatprep.subr.mxu0 %v144
    %208 = vmatpush1.msra.mxu0 %v143
    %209 = vmatprep.subr.mxu0 %v146
    %210 = vmatpush1.msra.mxu0 %v145
    %211 = vmatprep.subr.mxu0 %v148
    %212 = vmatpush1.msra.mxu0 %v147
    %213 = vmatprep.mubr.f32.mxu0 %v84
    %214 = vmatmul.mubr.f32.gmra.mrb[0].mxu0 %v83
    %v215 = vpop.f32.mrb[0].mxu0
    %v216 = vadd.f32 0.0, %v215
    %v217 = vpop.f32.mrb[0].mxu0
    %v218 = vadd.f32 0.0, %v217
    %219 = vdwg.mxu0
    %v220 = vld [vmem:[#allocation2] sm:$0x3]
    %v221 = vld [vmem:[#allocation7] sm:$0xff]
    %v223 = vlaneseq
    %v224 = vshrl.u32 %v223, 7
    %v225 = vsub.s32 0, %v224
    %v226 = vrot.slane %v220, %v225
    %v227 = vlaneseq
    %v228 = vshrl.u32 %v227, 7
    %v229 = vsub.s32 1, %v228
    %v230 = vrot.slane %v220, %v229
    %v233 = vmul.f32 %v226, %v216
    %v234 = vmul.f32 %v230, %v218
    %v235 = vmul.f32 %v220, %v220
    %v237 = vlaneseq
    %v238 = vshrl.u32 %v237, 7
    %v239 = vsub.s32 0, %v238
    %v240 = vrot.slane %v235, %v239
    %v241 = vlaneseq
    %v242 = vshrl.u32 %v241, 7
    %v243 = vsub.s32 1, %v242
    %v244 = vrot.slane %v235, %v243
    %v247 = vmul.f32 %v240, %v216
    %v248 = vmul.f32 %v244, %v218
    %v249 = vmul.f32 %v235, %v220
    %v251 = vlaneseq
    %v252 = vshrl.u32 %v251, 7
    %v253 = vsub.s32 0, %v252
    %v254 = vrot.slane %v249, %v253
    %v255 = vlaneseq
    %v256 = vshrl.u32 %v255, 7
    %v257 = vsub.s32 1, %v256
    %v258 = vrot.slane %v249, %v257
    %v261 = vmul.f32 %v254, %v216
    %v262 = vmul.f32 %v258, %v218
    %vm263 = vcmask 261120
    %v265 = vsel %vm263, %v221, 0
    %267 = vmatprep.subr.mxu0 %v218
    %268 = vmatpush1.msra.mxu0 %v216
    %269 = vmatprep.subr.mxu0 %v234
    %270 = vmatpush1.msra.mxu0 %v233
    %271 = vmatprep.subr.mxu0 %v248
    %272 = vmatpush1.msra.mxu0 %v247
    %273 = vmatprep.subr.mxu0 %v262
    %274 = vmatpush1.msra.mxu0 %v261
    %275 = vmatprep.subr.mxu0 0.0
    %276 = vmatpush1.msra.mxu0 0.0
    %277 = vmatprep.subr.mxu0 0.0
    %278 = vmatpush1.msra.mxu0 0.0
    %279 = vmatprep.subr.mxu0 0.0
    %280 = vmatpush1.msra.mxu0 0.0
    %281 = vmatprep.subr.mxu0 0.0
    %282 = vmatpush1.msra.mxu0 0.0
    %283 = vmatprep.subr.mxu0 0.0
    %284 = vmatpush1.msra.mxu0 0.0
    %285 = vmatprep.subr.mxu0 0.0
    %286 = vmatpush1.msra.mxu0 0.0
    %287 = vmatprep.subr.mxu0 0.0
    %288 = vmatpush1.msra.mxu0 0.0
    %289 = vmatprep.subr.mxu0 0.0
    %290 = vmatpush1.msra.mxu0 0.0
    %291 = vmatprep.subr.mxu0 0.0
    %292 = vmatpush1.msra.mxu0 0.0
    %293 = vmatprep.subr.mxu0 0.0
    %294 = vmatpush1.msra.mxu0 0.0
    %295 = vmatprep.subr.mxu0 0.0
    %296 = vmatpush1.msra.mxu0 0.0
    %297 = vmatprep.subr.mxu0 0.0
    %298 = vmatpush1.msra.mxu0 0.0
    %299 = vmatprep.subr.mxu0 0.0
    %300 = vmatpush1.msra.mxu0 0.0
    %301 = vmatprep.subr.mxu0 0.0
    %302 = vmatpush1.msra.mxu0 0.0
    %303 = vmatprep.subr.mxu0 0.0
    %304 = vmatpush1.msra.mxu0 0.0
    %305 = vmatprep.subr.mxu0 0.0
    %306 = vmatpush1.msra.mxu0 0.0
    %307 = vmatprep.subr.mxu0 0.0
    %308 = vmatpush1.msra.mxu0 0.0
    %309 = vmatprep.subr.mxu0 0.0
    %310 = vmatpush1.msra.mxu0 0.0
    %311 = vmatprep.subr.mxu0 0.0
    %312 = vmatpush1.msra.mxu0 0.0
    %313 = vmatprep.subr.mxu0 0.0
    %314 = vmatpush1.msra.mxu0 0.0
    %315 = vmatprep.subr.mxu0 0.0
    %316 = vmatpush1.msra.mxu0 0.0
    %317 = vmatprep.subr.mxu0 0.0
    %318 = vmatpush1.msra.mxu0 0.0
    %319 = vmatprep.subr.mxu0 0.0
    %320 = vmatpush1.msra.mxu0 0.0
    %321 = vmatprep.subr.mxu0 0.0
    %322 = vmatpush1.msra.mxu0 0.0
    %323 = vmatprep.subr.mxu0 0.0
    %324 = vmatpush1.msra.mxu0 0.0
    %325 = vmatprep.subr.mxu0 0.0
    %326 = vmatpush1.msra.mxu0 0.0
    %327 = vmatprep.subr.mxu0 0.0
    %328 = vmatpush1.msra.mxu0 0.0
    %329 = vmatprep.subr.mxu0 0.0
    %330 = vmatpush1.msra.mxu0 0.0
    %331 = vmatprep.mubr.f32.mxu0 0.0
    %332 = vmatmul.mubr.f32.gmra.mrb[0].mxu0 %v265
    %v333 = vpop.f32.mrb[0].mxu0
    %v334 = vadd.f32 0.0, %v333
    %v335 = vpop.f32.mrb[0].mxu0
    %v336 = vadd.f32 0.0, %v335
    %337 = vdwg.mxu0
    %v338 = vld [vmem:[#allocation10] sm:$0xff]
    %v339 = vld [vmem:[#allocation10 + $0x8] sm:$0xff]
    %v340 = vld [vmem:[#allocation10 + $0x10] sm:$0xff]
    %v341 = vld [vmem:[#allocation10 + $0x18] sm:$0xff]
    %v342 = vld [vmem:[#allocation10 + $0x20] sm:$0xff]
    %v343 = vld [vmem:[#allocation10 + $0x28] sm:$0xff]
    %v344 = vld [vmem:[#allocation10 + $0x30] sm:$0xff]
    %v345 = vld [vmem:[#allocation10 + $0x38] sm:$0xff]
    %v346 = vld [vmem:[#allocation10 + $0x40] sm:$0xff]
    %v347 = vld [vmem:[#allocation10 + $0x48] sm:$0xff]
    %v348 = vld [vmem:[#allocation10 + $0x50] sm:$0xff]
    %v349 = vld [vmem:[#allocation10 + $0x58] sm:$0xff]
    %v350 = vld [vmem:[#allocation10 + $0x60] sm:$0xff]
    %v351 = vld [vmem:[#allocation10 + $0x68] sm:$0xff]
    %v352 = vld [vmem:[#allocation10 + $0x70] sm:$0xff]
    %v353 = vld [vmem:[#allocation10 + $0x78] sm:$0xff]
    %v354 = vld [vmem:[#allocation10 + $0x80] sm:$0xff]
    %v355 = vld [vmem:[#allocation10 + $0x88] sm:$0xff]
    %v356 = vld [vmem:[#allocation10 + $0x90] sm:$0xff]
    %v357 = vld [vmem:[#allocation10 + $0x98] sm:$0xff]
    %v358 = vld [vmem:[#allocation10 + $0xa0] sm:$0xff]
    %v359 = vld [vmem:[#allocation10 + $0xa8] sm:$0xff]
    %v360 = vld [vmem:[#allocation10 + $0xb0] sm:$0xff]
    %v361 = vld [vmem:[#allocation10 + $0xb8] sm:$0xff]
    %v362 = vld [vmem:[#allocation10 + $0xc0] sm:$0xff]
    %v363 = vld [vmem:[#allocation10 + $0xc8] sm:$0xff]
    %v364 = vld [vmem:[#allocation10 + $0xd0] sm:$0xff]
    %v365 = vld [vmem:[#allocation10 + $0xd8] sm:$0xff]
    %v366 = vld [vmem:[#allocation10 + $0xe0] sm:$0xff]
    %v367 = vld [vmem:[#allocation10 + $0xe8] sm:$0xff]
    %v368 = vld [vmem:[#allocation10 + $0xf0] sm:$0xff]
    %v369 = vld [vmem:[#allocation10 + $0xf8] sm:$0xff]
    %v370 = vld [vmem:[#allocation10 + $0x100] sm:$0xff]
    %v371 = vld [vmem:[#allocation10 + $0x108] sm:$0xff]
    %v372 = vld [vmem:[#allocation10 + $0x110] sm:$0xff]
    %v373 = vld [vmem:[#allocation10 + $0x118] sm:$0xff]
    %v374 = vld [vmem:[#allocation10 + $0x120] sm:$0xff]
    %v375 = vld [vmem:[#allocation10 + $0x128] sm:$0xff]
    %v376 = vld [vmem:[#allocation10 + $0x130] sm:$0xff]
    %v377 = vld [vmem:[#allocation10 + $0x138] sm:$0xff]
    %v378 = vld [vmem:[#allocation10 + $0x140] sm:$0xff]
    %v379 = vld [vmem:[#allocation10 + $0x148] sm:$0xff]
    %v380 = vld [vmem:[#allocation10 + $0x150] sm:$0xff]
    %v381 = vld [vmem:[#allocation10 + $0x158] sm:$0xff]
    %v382 = vld [vmem:[#allocation10 + $0x160] sm:$0xff]
    %v383 = vld [vmem:[#allocation10 + $0x168] sm:$0xff]
    %v384 = vld [vmem:[#allocation10 + $0x170] sm:$0xff]
    %v385 = vld [vmem:[#allocation10 + $0x178] sm:$0xff]
    %v386 = vld [vmem:[#allocation10 + $0x180] sm:$0xff]
    %v387 = vld [vmem:[#allocation10 + $0x188] sm:$0xff]
    %v388 = vld [vmem:[#allocation10 + $0x190] sm:$0xff]
    %v389 = vld [vmem:[#allocation10 + $0x198] sm:$0xff]
    %v390 = vld [vmem:[#allocation10 + $0x1a0] sm:$0xff]
    %v391 = vld [vmem:[#allocation10 + $0x1a8] sm:$0xff]
    %v392 = vld [vmem:[#allocation10 + $0x1b0] sm:$0xff]
    %v393 = vld [vmem:[#allocation10 + $0x1b8] sm:$0xff]
    %v394 = vld [vmem:[#allocation10 + $0x1c0] sm:$0xff]
    %v395 = vld [vmem:[#allocation10 + $0x1c8] sm:$0xff]
    %v396 = vld [vmem:[#allocation10 + $0x1d0] sm:$0xff]
    %v397 = vld [vmem:[#allocation10 + $0x1d8] sm:$0xff]
    %v398 = vld [vmem:[#allocation10 + $0x1e0] sm:$0xff]
    %v399 = vld [vmem:[#allocation10 + $0x1e8] sm:$0xff]
    %v400 = vld [vmem:[#allocation10 + $0x1f0] sm:$0xff]
    %v401 = vld [vmem:[#allocation10 + $0x1f8] sm:$0xff]
    %402 = vmatprep.subr.mxu0 %v339
    %403 = vmatpush1.msra.mxu0 %v338
    %404 = vmatprep.subr.mxu0 %v341
    %405 = vmatpush1.msra.mxu0 %v340
    %406 = vmatprep.subr.mxu0 %v343
    %407 = vmatpush1.msra.mxu0 %v342
    %408 = vmatprep.subr.mxu0 %v345
    %409 = vmatpush1.msra.mxu0 %v344
    %410 = vmatprep.subr.mxu0 %v347
    %411 = vmatpush1.msra.mxu0 %v346
    %412 = vmatprep.subr.mxu0 %v349
    %413 = vmatpush1.msra.mxu0 %v348
    %414 = vmatprep.subr.mxu0 %v351
    %415 = vmatpush1.msra.mxu0 %v350
    %416 = vmatprep.subr.mxu0 %v353
    %417 = vmatpush1.msra.mxu0 %v352
    %418 = vmatprep.subr.mxu0 %v355
    %419 = vmatpush1.msra.mxu0 %v354
    %420 = vmatprep.subr.mxu0 %v357
    %421 = vmatpush1.msra.mxu0 %v356
    %422 = vmatprep.subr.mxu0 %v359
    %423 = vmatpush1.msra.mxu0 %v358
    %424 = vmatprep.subr.mxu0 %v361
    %425 = vmatpush1.msra.mxu0 %v360
    %426 = vmatprep.subr.mxu0 %v363
    %427 = vmatpush1.msra.mxu0 %v362
    %428 = vmatprep.subr.mxu0 %v365
    %429 = vmatpush1.msra.mxu0 %v364
    %430 = vmatprep.subr.mxu0 %v367
    %431 = vmatpush1.msra.mxu0 %v366
    %432 = vmatprep.subr.mxu0 %v369
    %433 = vmatpush1.msra.mxu0 %v368
    %434 = vmatprep.subr.mxu0 %v371
    %435 = vmatpush1.msra.mxu0 %v370
    %436 = vmatprep.subr.mxu0 %v373
    %437 = vmatpush1.msra.mxu0 %v372
    %438 = vmatprep.subr.mxu0 %v375
    %439 = vmatpush1.msra.mxu0 %v374
    %440 = vmatprep.subr.mxu0 %v377
    %441 = vmatpush1.msra.mxu0 %v376
    %442 = vmatprep.subr.mxu0 %v379
    %443 = vmatpush1.msra.mxu0 %v378
    %444 = vmatprep.subr.mxu0 %v381
    %445 = vmatpush1.msra.mxu0 %v380
    %446 = vmatprep.subr.mxu0 %v383
    %447 = vmatpush1.msra.mxu0 %v382
    %448 = vmatprep.subr.mxu0 %v385
    %449 = vmatpush1.msra.mxu0 %v384
    %450 = vmatprep.subr.mxu0 %v387
    %451 = vmatpush1.msra.mxu0 %v386
    %452 = vmatprep.subr.mxu0 %v389
    %453 = vmatpush1.msra.mxu0 %v388
    %454 = vmatprep.subr.mxu0 %v391
    %455 = vmatpush1.msra.mxu0 %v390
    %456 = vmatprep.subr.mxu0 %v393
    %457 = vmatpush1.msra.mxu0 %v392
    %458 = vmatprep.subr.mxu0 %v395
    %459 = vmatpush1.msra.mxu0 %v394
    %460 = vmatprep.subr.mxu0 %v397
    %461 = vmatpush1.msra.mxu0 %v396
    %462 = vmatprep.subr.mxu0 %v399
    %463 = vmatpush1.msra.mxu0 %v398
    %464 = vmatprep.subr.mxu0 %v401
    %465 = vmatpush1.msra.mxu0 %v400
    %466 = vmatprep.mubr.f32.mxu0 %v336
    %467 = vmatmul.mubr.f32.gmra.mrb[0].mxu0 %v334
    %v468 = vpop.f32.mrb[0].mxu0
    %v469 = vadd.f32 0.0, %v468
    %v470 = vpop.f32.mrb[0].mxu0
    %v471 = vadd.f32 0.0, %v470
    %472 = vdwg.mxu0
    %473 = vst [vmem:[#allocation11] sm:$0xff] %v469
    %474 = vst [vmem:[#allocation11 + $0x8] sm:$0xff] %v471
    // Predicated region
    $region42: #{tpu_custom_call.1} parent=1 // pred_check
      _
    $region43: #{tpu_custom_call.1} parent=1 // pred_check_branch
      %476 = sbr.rel (0) target = $region45
    $region44: #{tpu_custom_call.1} parent=1 // pred_region
      %s478 = ssub.s32 256, 256
      %479 = vsyncadd [#allocation4], %s478
      %s481 = sshll.u32 [#allocation11], 4
      %s482 = int_to_ptr.vmem [resolvable:$true] %s481
      %484 = dma.vmem_to_hbm [thread:$0]  %s482, 256, %s5, [#allocation4]
    $region45: #{tpu_custom_call.1} parent=1 // pred_fallthru
      _
    // Predicated region
    $region46: #{tpu_custom_call.1} parent=1 // pred_check
      _
    $region47: #{tpu_custom_call.1} parent=1 // pred_check_branch
      %486 = sbr.rel (0) target = $region49
    $region48: #{tpu_custom_call.1} parent=1 // pred_region
      %487 = dma.done [#allocation4], 256
    $region49: #{tpu_custom_call.1} parent=1 // pred_fallthru
      _
    %488 = vsyncpa [#allocation3], 1
    %489 = vsyncpa [#allocation6], 1
    %490 = vsyncpa [#allocation9], 1
    %491 = vsyncpa [#allocation4], 1

</llo_original>
